<compile_context>
chip_gen: v7x
topology: tpu7x:2x2x1
jax: 0.10.0
libtpu: 0.0.40
codegen_flags: <defaults>
</compile_context>

<pallas_src>
import jax
import jax.numpy as jnp
from jax.experimental import pallas as pl
from jax.experimental.pallas import tpu as pltpu


def _cast_kernel(x_ref, o_ref):
    # Elementwise dtype cast on the current VMEM tile.
    o_ref[...] = x_ref[...].astype(o_ref.dtype)


# Lane widths to try for the lane-dense reshape (all multiples of 128).
_LANE_WIDTHS = (4096, 2048, 1024, 512, 256, 128)


def _hw_config():
    """Generation-aware budgets.  Conservative (v7x-safe) fallback."""
    vmem_cap = None
    try:
        info = pltpu.get_tpu_info()
        vmem_cap = getattr(info, "vmem_capacity_bytes", None)
    except Exception:
        vmem_cap = None
    if vmem_cap is None or vmem_cap <= (64 << 20):
        # v7x (64 MiB VMEM/TC, 2 TCs, ~3.2 TB/s HBM) or unknown -> conservative.
        return {
            "per_block_bytes": 4 << 20,    # in_tile + out_tile per grid step
            "vmem_limit_bytes": 32 << 20,  # fits default scoped limit on v7x
            "min_steps": 8,                # >=4 steps per TensorCore
            "min_pallas_bytes": 2 << 20,   # launch + ramp dominates below this
        }
    # v5e / v6e: 128 MiB physical VMEM, single TC.
    return {
        "per_block_bytes": 12 << 20,
        "vmem_limit_bytes": 64 << 20,
        "min_steps": 4,
        "min_pallas_bytes": 1 << 20,
    }


def _pick_lane_width(n: int) -> tuple[int, bool]:
    """Pick a lane width C (multiple of 128).  Returns (C, needs_padding)."""
    # Prefer an exact divisor (no pad/slice copies) with a healthy row count.
    for cw in _LANE_WIDTHS:
        if n % cw == 0 and n // cw >= 8:
            return cw, False
    # Otherwise pad: largest width that still leaves >= 8 rows.
    for cw in _LANE_WIDTHS:
        if n >= cw * 8:
            return cw, True
    # Tiny tensors (normally handled by the fast path): single padded block.
    return 128, True


def _pick_tile_rows(R: int, C: int, in_item: int, out_item: int,
                    cfg: dict, row_align: int) -> int:
    """Row-tile: budget-capped, >= min_steps grid steps, >= ~1 MiB per block."""
    bytes_per_row = C * (in_item + out_item)

    def align_up(r):
        return pl.cdiv(r, row_align) * row_align

    # Upper bound from the per-block VMEM budget (pipeline double-buffers it).
    budget_rows = max(row_align,
                      (cfg["per_block_bytes"] // bytes_per_row) // row_align * row_align)
    # Rows that yield >= min_steps grid steps (pipeline steady state).
    steps_rows = align_up(pl.cdiv(R, cfg["min_steps"]))
    # Rows that yield a >= ~1 MiB block (amortize per-step overhead).
    floor_rows = align_up(pl.cdiv(1 << 20, bytes_per_row))

    tile_r = min(budget_rows, max(steps_rows, floor_rows))
    if tile_r >= R:
        return R  # full extent: always a legal block shape
    return tile_r  # multiple of row_align (>= 8): legal block shape


def cast_tensor_to(x: jax.Array, dtype=jnp.float32, *,
                   min_pallas_bytes: int | None = None) -> jax.Array:
    """Pallas equivalent of CastTensorTo.forward: inputs.to(dtype)."""
    out_dtype = jnp.dtype(dtype)
    in_dtype = jnp.dtype(x.dtype)

    if x.size == 0:
        return x.astype(out_dtype)

    cfg = _hw_config()
    if min_pallas_bytes is None:
        min_pallas_bytes = cfg["min_pallas_bytes"]

    n = x.size
    in_bytes = n * in_dtype.itemsize
    out_bytes = n * out_dtype.itemsize

    # Fast path: tiny tensors are cheaper via XLA's native convert (often fused).
    if (in_bytes + out_bytes) < min_pallas_bytes:
        return x.astype(out_dtype)

    orig_shape = x.shape
    x_flat = x.reshape(-1)

    # 8-bit dtypes pack into (32,128) native tiles; keep rows 32-aligned then.
    row_align = 32 if (in_dtype.itemsize == 1 or out_dtype.itemsize == 1) else 8

    C, needs_pad = _pick_lane_width(n)
    if needs_pad:
        R = pl.cdiv(pl.cdiv(n, C), row_align) * row_align
        pad = R * C - n
        x2 = jnp.pad(x_flat, (0, pad)).reshape(R, C)
    else:
        R = n // C
        x2 = x_flat.reshape(R, C)

    tile_r = _pick_tile_rows(R, C, in_dtype.itemsize, out_dtype.itemsize,
                             cfg, row_align)
    grid = (pl.cdiv(R, tile_r),)

    padded_elems = R * C
    bytes_accessed = padded_elems * (in_dtype.itemsize + out_dtype.itemsize)

    out2 = pl.pallas_call(
        _cast_kernel,
        out_shape=jax.ShapeDtypeStruct((R, C), out_dtype),
        grid_spec=pltpu.PrefetchScalarGridSpec(
            num_scalar_prefetch=0,
            grid=grid,
            in_specs=[pl.BlockSpec((tile_r, C), lambda i: (i, 0))],
            out_specs=pl.BlockSpec((tile_r, C), lambda i: (i, 0)),
        ),
        compiler_params=pltpu.CompilerParams(
            dimension_semantics=("parallel",),
            vmem_limit_bytes=cfg["vmem_limit_bytes"],
        ),
        cost_estimate=pl.CostEstimate(
            flops=0, transcendentals=0, bytes_accessed=bytes_accessed
        ),
    )(x2)

    out_flat = out2.reshape(-1)
    if needs_pad:
        out_flat = out_flat[:n]
    return out_flat.reshape(orig_shape)


if __name__ == "__main__":
    key = jax.random.PRNGKey(0)

    # Typical preprocessing input: uint8 NCHW image batch (small demo shape).
    x_u8 = jax.random.randint(key, (2, 4, 16, 16), 0, 256, dtype=jnp.int32).astype(jnp.uint8)

    # CastTensorTo(dtype=torch.float32).  Force the Pallas path so the kernel
    # is exercised even at this small demo size.
    y = cast_tensor_to(x_u8, jnp.float32, min_pallas_bytes=0)
    jax.block_until_ready(y)
    assert y.dtype == jnp.float32
    assert y.shape == x_u8.shape
    assert jnp.allclose(y, x_u8.astype(jnp.float32))

    # .half() path (torch.float16 -> jnp.float16).
    x_f32 = jax.random.normal(jax.random.PRNGKey(1), (2, 4, 16, 16), dtype=jnp.float32)
    y_half = cast_tensor_to(x_f32, jnp.float16, min_pallas_bytes=0)
    jax.block_until_ready(y_half)
    assert y_half.dtype == jnp.float16
    assert jnp.allclose(y_half, x_f32.astype(jnp.float16))

    # Shape whose element count does NOT divide any lane width cleanly beyond
    # padding (2*3*30*30 = 5400): exercises the pad + slice lane-dense path.
    x_odd = jax.random.randint(jax.random.PRNGKey(2), (2, 3, 30, 30), 0, 256, dtype=jnp.int32).astype(jnp.uint8)
    y_odd = cast_tensor_to(x_odd, jnp.float32, min_pallas_bytes=0)
    jax.block_until_ready(y_odd)
    assert y_odd.dtype == jnp.float32
    assert y_odd.shape == x_odd.shape
    assert jnp.allclose(y_odd, x_odd.astype(jnp.float32))

    # Slightly larger NCHW input to exercise the exact-divisor multi-row path.
    x_big = jax.random.randint(jax.random.PRNGKey(3), (2, 3, 64, 64), 0, 256, dtype=jnp.int32).astype(jnp.uint8)
    y_big = cast_tensor_to(x_big, jnp.float32, min_pallas_bytes=0)
    jax.block_until_ready(y_big)
    assert y_big.dtype == jnp.float32
    assert y_big.shape == x_big.shape
    assert jnp.allclose(y_big, x_big.astype(jnp.float32))

    print("KERNEL_OK")
</pallas_src>

<mosaic_0001>
module attributes {stable_mosaic.version = 11 : i64} {
  func.func @_cast_kernel(%arg0: i32, %arg1: memref<8x256xi8, #tpu.memory_space<vmem>>, %arg2: memref<8x256xf32, #tpu.memory_space<vmem>>) attributes {dimension_semantics = [#tpu.dimension_semantics<parallel>], iteration_bounds = array<i64: 1>, scalar_prefetch = 0 : i64, scratch_operands = 0 : i64, tpu.core_type = #tpu.core_type<tc>, window_params = [{transform_indices = @transform_0, window_bounds = array<i64: 8, 256>}, {transform_indices = @transform_1, window_bounds = array<i64: 8, 256>}]} {
    %c0 = arith.constant 0 : index
    %c0_0 = arith.constant 0 : index
    %0 = vector.load %arg1[%c0, %c0_0] : memref<8x256xi8, #tpu.memory_space<vmem>>, vector<8x256xi8>
    %1 = arith.uitofp %0 : vector<8x256xi8> to vector<8x256xf32>
    %c0_1 = arith.constant 0 : index
    %c0_2 = arith.constant 0 : index
    %2 = vector.load %arg2[%c0_1, %c0_2] : memref<8x256xf32, #tpu.memory_space<vmem>>, vector<8x256xf32>
    tpu.vector_store %arg2[%c0_1, %c0_2], %1 {strides = array<i32>} : memref<8x256xf32, #tpu.memory_space<vmem>>, vector<8x256xf32>,
    return
  }
  func.func @transform_0(%arg0: i32) -> (i32, i32) {
    %c0_i32 = arith.constant 0 : i32
    %c0_i32_0 = arith.constant 0 : i32
    return %arg0, %c0_i32 : i32, i32
  }
  func.func @transform_1(%arg0: i32) -> (i32, i32) {
    %c0_i32 = arith.constant 0 : i32
    %c0_i32_0 = arith.constant 0 : i32
    return %arg0, %c0_i32 : i32, i32
  }
}

</mosaic_0001>

<llo_original>
// kernel: tpu_custom_call.1
$region0: #{tpu_custom_call.1}
  #allocation0 [shape = 'u32[]', space=smem, size = 0x4, offset = 0x4, fixed_abs, tag = 'smem constant byte address 0x4 - core index']
  #allocation1 [shape = 'u32[144,128]{1,0:T(1,128)}', space=vmem, size = 0x12000, scoped, tag = 'internal scratch']
  %s0 = inlined_call_operand.hbm [shape: u8[8,256], index: 0, kind: input, shape index: {}]
  %s1 = inlined_call_operand.hbm [shape: f32[8,256], index: 1, kind: output, shape index: {}]
  %s2 = sld [smem:[#allocation0]]
  $region18: #{tpu_custom_call.1} parent=0
    _
  %s4 = ssub.s32 1, %s2
  %s5 = scalar_select 0, %s4, %s2
  $region1: #{tpu_custom_call.1} parent=0
    #allocation2 [shape = 'u8[2048]{0}', space=vmem, size = 0x800, scoped, tag = 'input window, operand 0, single buffered']
    #allocation3 [shape = 's32[1]{0}', space=sflag, size = 0x4, scoped, tag = 'scoped memory for tpu_custom_call.1']
    #allocation4 [shape = 's32[1]{0}', space=sflag, size = 0x4, scoped, tag = 'scoped memory for tpu_custom_call.1']
    #allocation5 [shape = 'u8[8192]{0}', space=vmem, size = 0x2000, scoped, tag = 'output window, operand 0, single buffered']
    %6 = vsyncpa [#allocation3], 0
    %7 = vsyncpa [#allocation4], 0
    // Predicated region
    $region2: #{tpu_custom_call.1} parent=1 // pred_check
      _
    $region3: #{tpu_custom_call.1} parent=1 // pred_check_branch
      %9 = sbr.rel (0) target = $region5
    $region4: #{tpu_custom_call.1} parent=1 // pred_region
      %s11 = ssub.s32 64, 64
      %12 = vsyncadd [#allocation3], %s11
      %s14 = sshll.u32 [#allocation2], 4
      %s15 = int_to_ptr.vmem [resolvable:$true] %s14
      %17 = dma.hbm_to_vmem [thread:$0]  %s0, 64, %s15, [#allocation3]
    $region5: #{tpu_custom_call.1} parent=1 // pred_fallthru
      _
    // Predicated region
    $region6: #{tpu_custom_call.1} parent=1 // pred_check
      _
    $region7: #{tpu_custom_call.1} parent=1 // pred_check_branch
      %19 = sbr.rel (0) target = $region9
    $region8: #{tpu_custom_call.1} parent=1 // pred_region
      %20 = dma.done [#allocation3], 64
    $region9: #{tpu_custom_call.1} parent=1 // pred_fallthru
      _
    %v21 = vld [vmem:[#allocation2] sm:$0xf]
    %v22 = vunpack.c.0.s8 %v21
    %v23 = vunpack.c.1.s8 %v21
    %v24 = vand.u32 %v22, 255
    %v25 = vand.u32 %v23, 255
    %v26 = vcvt.s32.f32 %v24
    %v27 = vcvt.s32.f32 %v25
    %28 = vst [vmem:[#allocation5] sm:$0xff] %v26
    %29 = vst [vmem:[#allocation5 + $0x8] sm:$0xff] %v27
    // Predicated region
    $region10: #{tpu_custom_call.1} parent=1 // pred_check
      _
    $region11: #{tpu_custom_call.1} parent=1 // pred_check_branch
      %31 = sbr.rel (0) target = $region13
    $region12: #{tpu_custom_call.1} parent=1 // pred_region
      %s33 = ssub.s32 256, 256
      %34 = vsyncadd [#allocation4], %s33
      %s36 = sshll.u32 [#allocation5], 4
      %s37 = int_to_ptr.vmem [resolvable:$true] %s36
      %39 = dma.vmem_to_hbm [thread:$0]  %s37, 256, %s1, [#allocation4]
    $region13: #{tpu_custom_call.1} parent=1 // pred_fallthru
      _
    // Predicated region
    $region14: #{tpu_custom_call.1} parent=1 // pred_check
      _
    $region15: #{tpu_custom_call.1} parent=1 // pred_check_branch
      %41 = sbr.rel (0) target = $region17
    $region16: #{tpu_custom_call.1} parent=1 // pred_region
      %42 = dma.done [#allocation4], 256
    $region17: #{tpu_custom_call.1} parent=1 // pred_fallthru
      _
    %43 = vsyncpa [#allocation3], 1
    %44 = vsyncpa [#allocation4], 1

</llo_original>
